<compile_context>
chip_gen: v6e
topology: v6e:2x2x1
jax: 0.10.0
libtpu: 0.0.40
codegen_flags: <defaults>
</compile_context>

<pallas_src>
import jax
import jax.numpy as jnp
from jax import lax
from jax.experimental import pallas as pl
from jax.experimental.pallas import tpu as pltpu


def two_tower_kernel(
    xp_ref, xk_ref,                       # (tile_b, Dp), (tile_b, Dk)  natural layout
    w1pt_ref, b1p_ref, w2pt_ref, b2p_ref,  # problem tower: (H,Dp),(H,1),(E,H),(E,1)
    w1kt_ref, b1k_ref, w2kt_ref, b2k_ref,  # kernel  tower: (H,Dk),(H,1),(E,H),(E,1)
    wc1pt_ref, wc1kt_ref, bc1_ref,         # combination 1: (E,E),(E,E),(E,1)
    wc2_ref, bc2_ref,                      # combination 2: (E,1),(1,1)
    out_ref,                               # (1, tile_b)   lane-dense
):
    f32 = jnp.float32
    cdt = w1pt_ref.dtype                   # MXU operand dtype for layer 1

    # Contract the feature (lane) axis of the natural-layout tiles directly:
    # (H, D) x (tile_b, D) -> (H, tile_b).  Batch stays on lanes, so all later
    # matmuls are lane-filled and the result row is already lane-dense.
    ffc = (((1,), (1,)), ((), ()))

    hp = lax.dot_general(w1pt_ref[...], xp_ref[...].astype(cdt), ffc,
                         preferred_element_type=f32) + b1p_ref[...]
    hk = lax.dot_general(w1kt_ref[...], xk_ref[...].astype(cdt), ffc,
                         preferred_element_type=f32) + b1k_ref[...]
    hp = jnp.maximum(hp, 0.0)              # (H, tile_b)
    hk = jnp.maximum(hk, 0.0)

    # Tower layer 2.  Intermediates stay f32; if the (tiny, resident) weights
    # are bf16 they get promoted, which is far cheaper than packing hp/hk.
    pe = jnp.maximum(
        jnp.dot(w2pt_ref[...], hp, preferred_element_type=f32) + b2p_ref[...], 0.0)
    ke = jnp.maximum(
        jnp.dot(w2kt_ref[...], hk, preferred_element_type=f32) + b2k_ref[...], 0.0)

    # Combination layer 1: concat([p_emb, k_emb]) @ Wc1
    #   == Wc1[:E].T @ pe + Wc1[E:].T @ ke   (no concat needed at all)
    c = jnp.maximum(
        jnp.dot(wc1pt_ref[...], pe, preferred_element_type=f32)
        + jnp.dot(wc1kt_ref[...], ke, preferred_element_type=f32)
        + bc1_ref[...], 0.0)               # (E, tile_b)

    # Final Linear(E -> 1): VPU multiply + sublane reduction (MXU stays free);
    # the result is directly the lane-dense (1, tile_b) output row.
    eff = jnp.sum(c * wc2_ref[...], axis=0, keepdims=True) + bc2_ref[...]
    out_ref[...] = eff.astype(out_ref.dtype)


def prepare_params(params, dtype=jnp.float32):
    """One-time parameter packing (hoisted out of the per-call path).

    Weights are stored transposed (the kernel computes y.T = W.T @ x.T);
    biases stay f32 and are added after the f32 accumulation.
    """
    (w1p, b1p, w2p, b2p, w1k, b1k, w2k, b2k, wc1, bc1, wc2, bc2) = params
    H = w1p.shape[1]
    E = w2p.shape[1]
    return (
        w1p.T.astype(dtype),                 # (H, Dp)
        b1p.reshape(H, 1).astype(jnp.float32),
        w2p.T.astype(dtype),                 # (E, H)
        b2p.reshape(E, 1).astype(jnp.float32),
        w1k.T.astype(dtype),                 # (H, Dk)
        b1k.reshape(H, 1).astype(jnp.float32),
        w2k.T.astype(dtype),                 # (E, H)
        b2k.reshape(E, 1).astype(jnp.float32),
        wc1[:E, :].T.astype(dtype),          # (E, E)   top half of Wc1
        wc1[E:, :].T.astype(dtype),          # (E, E)   bottom half of Wc1
        bc1.reshape(E, 1).astype(jnp.float32),
        wc2.reshape(E, 1).astype(jnp.float32),   # used on the VPU, keep f32
        bc2.reshape(1, 1).astype(jnp.float32),
    )


def two_tower_forward(problem_x, kernel_x, packed, *, tile_b=None):
    (w1pt, b1p, w2pt, b2p, w1kt, b1k, w2kt, b2k,
     wc1pt, wc1kt, bc1, wc2, bc2) = packed
    B, Dp = problem_x.shape
    Bk, Dk = kernel_x.shape
    assert B == Bk, "problem_x and kernel_x must share the batch dimension"
    H = w1pt.shape[0]
    E = w2pt.shape[0]

    # Batch tiling: one step for small B; ~two even, lane-aligned tiles up to
    # 8192 (keeps both v7x TensorCores busy); 4096-wide tiles for huge B.
    if tile_b is None:
        if B <= 2048:
            tile_b = B
        elif B <= 8192:
            tile_b = -(-(-(-B // 2)) // 128) * 128
        else:
            tile_b = 4096
    n_tiles = -(-B // tile_b)
    if n_tiles > 1:
        assert tile_b % 128 == 0, "multi-tile grids need lane-aligned tile_b"
    # Partial last tiles are handled by Pallas (OOB rows only ever influence
    # OOB output columns, which are discarded) -- no wrapper-side padding pass.

    full = lambda r, c: pl.BlockSpec((r, c), lambda i: (0, 0))  # resident params

    out = pl.pallas_call(
        two_tower_kernel,
        out_shape=jax.ShapeDtypeStruct((1, B), jnp.float32),
        grid=(n_tiles,),
        in_specs=[
            pl.BlockSpec((tile_b, Dp), lambda i: (i, 0)),   # problem_x tile
            pl.BlockSpec((tile_b, Dk), lambda i: (i, 0)),   # kernel_x tile
            full(H, Dp), full(H, 1), full(E, H), full(E, 1),
            full(H, Dk), full(H, 1), full(E, H), full(E, 1),
            full(E, E), full(E, E), full(E, 1),
            full(E, 1), full(1, 1),
        ],
        out_specs=pl.BlockSpec((1, tile_b), lambda i: (0, i)),  # lane-dense
        compiler_params=pltpu.CompilerParams(
            dimension_semantics=("parallel",)),
    )(problem_x, kernel_x,
      w1pt, b1p, w2pt, b2p, w1kt, b1k, w2kt, b2k,
      wc1pt, wc1kt, bc1, wc2, bc2)

    return out[0]    # == .squeeze(1) of the PyTorch module


def reference_forward(problem_x, kernel_x, params):
    (w1p, b1p, w2p, b2p, w1k, b1k, w2k, b2k, wc1, bc1, wc2, bc2) = params
    relu = lambda x: jnp.maximum(x, 0.0)
    p = relu(relu(problem_x @ w1p + b1p) @ w2p + b2p)
    k = relu(relu(kernel_x @ w1k + b1k) @ w2k + b2k)
    c = jnp.concatenate([p, k], axis=1)
    return (relu(c @ wc1 + bc1) @ wc2 + bc2)[:, 0]


if __name__ == "__main__":
    problem_input_dim = 12
    kernel_input_dim = 20
    hidden_dim = 32
    embed_dim = 16

    key = jax.random.PRNGKey(0)
    keys = jax.random.split(key, 16)
    scale = 0.1
    w1p = scale * jax.random.normal(keys[0], (problem_input_dim, hidden_dim), jnp.float32)
    b1p = scale * jax.random.normal(keys[1], (hidden_dim,), jnp.float32)
    w2p = scale * jax.random.normal(keys[2], (hidden_dim, embed_dim), jnp.float32)
    b2p = scale * jax.random.normal(keys[3], (embed_dim,), jnp.float32)
    w1k = scale * jax.random.normal(keys[4], (kernel_input_dim, hidden_dim), jnp.float32)
    b1k = scale * jax.random.normal(keys[5], (hidden_dim,), jnp.float32)
    w2k = scale * jax.random.normal(keys[6], (hidden_dim, embed_dim), jnp.float32)
    b2k = scale * jax.random.normal(keys[7], (embed_dim,), jnp.float32)
    wc1 = scale * jax.random.normal(keys[8], (2 * embed_dim, embed_dim), jnp.float32)
    bc1 = scale * jax.random.normal(keys[9], (embed_dim,), jnp.float32)
    wc2 = scale * jax.random.normal(keys[10], (embed_dim, 1), jnp.float32)
    bc2 = scale * jax.random.normal(keys[11], (1,), jnp.float32)
    params = (w1p, b1p, w2p, b2p, w1k, b1k, w2k, b2k, wc1, bc1, wc2, bc2)

    packed = prepare_params(params)                  # one-time packing (hoisted)
    fwd = jax.jit(two_tower_forward, static_argnames=("tile_b",))

    # 1) small batch, f32 inputs, single grid step -- tight tolerance
    B = 16
    px = jax.random.normal(keys[12], (B, problem_input_dim), jnp.float32)
    kx = jax.random.normal(keys[13], (B, kernel_input_dim), jnp.float32)
    ref = reference_forward(px, kx, params)
    out = jax.block_until_ready(fwd(px, kx, packed))
    assert out.shape == (B,)
    assert jnp.allclose(out, ref, atol=1e-5, rtol=1e-5), (out, ref)

    # 2) bf16 activation stream (halves the dominant HBM input traffic on
    #    v6e/v7x), f32 accumulation -- loose tolerance
    out_bf16 = jax.block_until_ready(
        fwd(px.astype(jnp.bfloat16), kx.astype(jnp.bfloat16), packed))
    assert jnp.allclose(out_bf16, ref, atol=5e-2, rtol=5e-2), (out_bf16, ref)

    # 3) multi-tile grid, including a partial (non-divisible) last tile
    for Bb, tb in ((384, 128), (300, 128)):
        px2 = jax.random.normal(keys[14], (Bb, problem_input_dim), jnp.float32)
        kx2 = jax.random.normal(keys[15], (Bb, kernel_input_dim), jnp.float32)
        ref2 = reference_forward(px2, kx2, params)
        out2 = jax.block_until_ready(fwd(px2, kx2, packed, tile_b=tb))
        assert out2.shape == (Bb,)
        assert jnp.allclose(out2, ref2, atol=1e-5, rtol=1e-5), (Bb, out2, ref2)

    print("KERNEL_OK")
</pallas_src>

<mosaic_0001>
module attributes {stable_mosaic.version = 11 : i64} {
  func.func @two_tower_kernel(%arg0: i32, %arg1: memref<16x12xf32, #tpu.memory_space<vmem>>, %arg2: memref<16x20xf32, #tpu.memory_space<vmem>>, %arg3: memref<32x12xf32, #tpu.memory_space<vmem>>, %arg4: memref<32x1xf32, #tpu.memory_space<vmem>>, %arg5: memref<16x32xf32, #tpu.memory_space<vmem>>, %arg6: memref<16x1xf32, #tpu.memory_space<vmem>>, %arg7: memref<32x20xf32, #tpu.memory_space<vmem>>, %arg8: memref<32x1xf32, #tpu.memory_space<vmem>>, %arg9: memref<16x32xf32, #tpu.memory_space<vmem>>, %arg10: memref<16x1xf32, #tpu.memory_space<vmem>>, %arg11: memref<16x16xf32, #tpu.memory_space<vmem>>, %arg12: memref<16x16xf32, #tpu.memory_space<vmem>>, %arg13: memref<16x1xf32, #tpu.memory_space<vmem>>, %arg14: memref<16x1xf32, #tpu.memory_space<vmem>>, %arg15: memref<1x1xf32, #tpu.memory_space<vmem>>, %arg16: memref<1x16xf32, #tpu.memory_space<vmem>>) attributes {dimension_semantics = [#tpu.dimension_semantics<parallel>], iteration_bounds = array<i64: 1>, scalar_prefetch = 0 : i64, scratch_operands = 0 : i64, tpu.core_type = #tpu.core_type<tc>, window_params = [{transform_indices = @transform_0, window_bounds = array<i64: 16, 12>}, {transform_indices = @transform_1, window_bounds = array<i64: 16, 20>}, {pipeline_mode = #tpu.pipeline_mode<synchronous>, transform_indices = @transform_2, window_bounds = array<i64: 32, 12>}, {pipeline_mode = #tpu.pipeline_mode<synchronous>, transform_indices = @transform_3, window_bounds = array<i64: 32, 1>}, {pipeline_mode = #tpu.pipeline_mode<synchronous>, transform_indices = @transform_4, window_bounds = array<i64: 16, 32>}, {pipeline_mode = #tpu.pipeline_mode<synchronous>, transform_indices = @transform_5, window_bounds = array<i64: 16, 1>}, {pipeline_mode = #tpu.pipeline_mode<synchronous>, transform_indices = @transform_6, window_bounds = array<i64: 32, 20>}, {pipeline_mode = #tpu.pipeline_mode<synchronous>, transform_indices = @transform_7, window_bounds = array<i64: 32, 1>}, {pipeline_mode = #tpu.pipeline_mode<synchronous>, transform_indices = @transform_8, window_bounds = array<i64: 16, 32>}, {pipeline_mode = #tpu.pipeline_mode<synchronous>, transform_indices = @transform_9, window_bounds = array<i64: 16, 1>}, {pipeline_mode = #tpu.pipeline_mode<synchronous>, transform_indices = @transform_10, window_bounds = array<i64: 16, 16>}, {pipeline_mode = #tpu.pipeline_mode<synchronous>, transform_indices = @transform_11, window_bounds = array<i64: 16, 16>}, {pipeline_mode = #tpu.pipeline_mode<synchronous>, transform_indices = @transform_12, window_bounds = array<i64: 16, 1>}, {pipeline_mode = #tpu.pipeline_mode<synchronous>, transform_indices = @transform_13, window_bounds = array<i64: 16, 1>}, {pipeline_mode = #tpu.pipeline_mode<synchronous>, transform_indices = @transform_14, window_bounds = array<i64: 1, 1>}, {transform_indices = @transform_15, window_bounds = array<i64: 1, 16>}]} {
    %c0 = arith.constant 0 : index
    %c0_0 = arith.constant 0 : index
    %0 = vector.load %arg3[%c0, %c0_0] : memref<32x12xf32, #tpu.memory_space<vmem>>, vector<32x12xf32>
    %c0_1 = arith.constant 0 : index
    %c0_2 = arith.constant 0 : index
    %1 = vector.load %arg1[%c0_1, %c0_2] : memref<16x12xf32, #tpu.memory_space<vmem>>, vector<16x12xf32>
    %cst = arith.constant dense<0.000000e+00> : vector<32x16xf32>
    %2 = tpu.matmul %0, %1, %cst {dimension_numbers = #tpu.dot_dimension_numbers<[1], [1], [0], [0], [0, 0, 1, 0], [], []>} : vector<32x12xf32>, vector<16x12xf32>, vector<32x16xf32> -> vector<32x16xf32>
    %c0_3 = arith.constant 0 : index
    %c0_4 = arith.constant 0 : index
    %3 = vector.load %arg4[%c0_3, %c0_4] : memref<32x1xf32, #tpu.memory_space<vmem>>, vector<32x1xf32>
    %4 = vector.broadcast %3 : vector<32x1xf32> to vector<32x16xf32>
    %5 = arith.addf %2, %4 : vector<32x16xf32>
    %c0_5 = arith.constant 0 : index
    %c0_6 = arith.constant 0 : index
    %6 = vector.load %arg7[%c0_5, %c0_6] : memref<32x20xf32, #tpu.memory_space<vmem>>, vector<32x20xf32>
    %c0_7 = arith.constant 0 : index
    %c0_8 = arith.constant 0 : index
    %7 = vector.load %arg2[%c0_7, %c0_8] : memref<16x20xf32, #tpu.memory_space<vmem>>, vector<16x20xf32>
    %cst_9 = arith.constant dense<0.000000e+00> : vector<32x16xf32>
    %8 = tpu.matmul %6, %7, %cst_9 {dimension_numbers = #tpu.dot_dimension_numbers<[1], [1], [0], [0], [0, 0, 1, 0], [], []>} : vector<32x20xf32>, vector<16x20xf32>, vector<32x16xf32> -> vector<32x16xf32>
    %c0_10 = arith.constant 0 : index
    %c0_11 = arith.constant 0 : index
    %9 = vector.load %arg8[%c0_10, %c0_11] : memref<32x1xf32, #tpu.memory_space<vmem>>, vector<32x1xf32>
    %10 = vector.broadcast %9 : vector<32x1xf32> to vector<32x16xf32>
    %11 = arith.addf %8, %10 : vector<32x16xf32>
    %cst_12 = arith.constant 0.000000e+00 : f32
    %12 = vector.broadcast %cst_12 : f32 to vector<32x16xf32>
    %13 = arith.maximumf %5, %12 : vector<32x16xf32>
    %cst_13 = arith.constant 0.000000e+00 : f32
    %14 = vector.broadcast %cst_13 : f32 to vector<32x16xf32>
    %15 = arith.maximumf %11, %14 : vector<32x16xf32>
    %c0_14 = arith.constant 0 : index
    %c0_15 = arith.constant 0 : index
    %16 = vector.load %arg5[%c0_14, %c0_15] : memref<16x32xf32, #tpu.memory_space<vmem>>, vector<16x32xf32>
    %cst_16 = arith.constant dense<0.000000e+00> : vector<16x16xf32>
    %17 = tpu.matmul %16, %13, %cst_16 {dimension_numbers = #tpu.dot_dimension_numbers<[1], [0], [0], [1], [0, 0, 1, 1], [], []>} : vector<16x32xf32>, vector<32x16xf32>, vector<16x16xf32> -> vector<16x16xf32>
    %c0_17 = arith.constant 0 : index
    %c0_18 = arith.constant 0 : index
    %18 = vector.load %arg6[%c0_17, %c0_18] : memref<16x1xf32, #tpu.memory_space<vmem>>, vector<16x1xf32>
    %19 = vector.broadcast %18 : vector<16x1xf32> to vector<16x16xf32>
    %20 = arith.addf %17, %19 : vector<16x16xf32>
    %cst_19 = arith.constant 0.000000e+00 : f32
    %21 = vector.broadcast %cst_19 : f32 to vector<16x16xf32>
    %22 = arith.maximumf %20, %21 : vector<16x16xf32>
    %c0_20 = arith.constant 0 : index
    %c0_21 = arith.constant 0 : index
    %23 = vector.load %arg9[%c0_20, %c0_21] : memref<16x32xf32, #tpu.memory_space<vmem>>, vector<16x32xf32>
    %cst_22 = arith.constant dense<0.000000e+00> : vector<16x16xf32>
    %24 = tpu.matmul %23, %15, %cst_22 {dimension_numbers = #tpu.dot_dimension_numbers<[1], [0], [0], [1], [0, 0, 1, 1], [], []>} : vector<16x32xf32>, vector<32x16xf32>, vector<16x16xf32> -> vector<16x16xf32>
    %c0_23 = arith.constant 0 : index
    %c0_24 = arith.constant 0 : index
    %25 = vector.load %arg10[%c0_23, %c0_24] : memref<16x1xf32, #tpu.memory_space<vmem>>, vector<16x1xf32>
    %26 = vector.broadcast %25 : vector<16x1xf32> to vector<16x16xf32>
    %27 = arith.addf %24, %26 : vector<16x16xf32>
    %cst_25 = arith.constant 0.000000e+00 : f32
    %28 = vector.broadcast %cst_25 : f32 to vector<16x16xf32>
    %29 = arith.maximumf %27, %28 : vector<16x16xf32>
    %c0_26 = arith.constant 0 : index
    %c0_27 = arith.constant 0 : index
    %30 = vector.load %arg11[%c0_26, %c0_27] : memref<16x16xf32, #tpu.memory_space<vmem>>, vector<16x16xf32>
    %cst_28 = arith.constant dense<0.000000e+00> : vector<16x16xf32>
    %31 = tpu.matmul %30, %22, %cst_28 {dimension_numbers = #tpu.dot_dimension_numbers<[1], [0], [0], [1], [0, 0, 1, 1], [], []>} : vector<16x16xf32>, vector<16x16xf32>, vector<16x16xf32> -> vector<16x16xf32>
    %c0_29 = arith.constant 0 : index
    %c0_30 = arith.constant 0 : index
    %32 = vector.load %arg12[%c0_29, %c0_30] : memref<16x16xf32, #tpu.memory_space<vmem>>, vector<16x16xf32>
    %cst_31 = arith.constant dense<0.000000e+00> : vector<16x16xf32>
    %33 = tpu.matmul %32, %29, %cst_31 {dimension_numbers = #tpu.dot_dimension_numbers<[1], [0], [0], [1], [0, 0, 1, 1], [], []>} : vector<16x16xf32>, vector<16x16xf32>, vector<16x16xf32> -> vector<16x16xf32>
    %34 = arith.addf %31, %33 : vector<16x16xf32>
    %c0_32 = arith.constant 0 : index
    %c0_33 = arith.constant 0 : index
    %35 = vector.load %arg13[%c0_32, %c0_33] : memref<16x1xf32, #tpu.memory_space<vmem>>, vector<16x1xf32>
    %36 = vector.broadcast %35 : vector<16x1xf32> to vector<16x16xf32>
    %37 = arith.addf %34, %36 : vector<16x16xf32>
    %cst_34 = arith.constant 0.000000e+00 : f32
    %38 = vector.broadcast %cst_34 : f32 to vector<16x16xf32>
    %39 = arith.maximumf %37, %38 : vector<16x16xf32>
    %c0_35 = arith.constant 0 : index
    %c0_36 = arith.constant 0 : index
    %40 = vector.load %arg14[%c0_35, %c0_36] : memref<16x1xf32, #tpu.memory_space<vmem>>, vector<16x1xf32>
    %41 = vector.broadcast %40 : vector<16x1xf32> to vector<16x16xf32>
    %42 = arith.mulf %39, %41 : vector<16x16xf32>
    %cst_37 = arith.constant dense<0.000000e+00> : vector<16xf32>
    %43 = vector.multi_reduction <add>, %42, %cst_37 [0] : vector<16x16xf32> to vector<16xf32>
    %44 = vector.shape_cast %43 : vector<16xf32> to vector<1x16xf32>
    %c0_38 = arith.constant 0 : index
    %c0_39 = arith.constant 0 : index
    %45 = vector.load %arg15[%c0_38, %c0_39] : memref<1x1xf32, #tpu.memory_space<vmem>>, vector<1x1xf32>
    %46 = vector.broadcast %45 : vector<1x1xf32> to vector<1x16xf32>
    %47 = arith.addf %44, %46 : vector<1x16xf32>
    %c0_40 = arith.constant 0 : index
    %c0_41 = arith.constant 0 : index
    %48 = vector.load %arg16[%c0_40, %c0_41] : memref<1x16xf32, #tpu.memory_space<vmem>>, vector<1x16xf32>
    tpu.vector_store %arg16[%c0_40, %c0_41], %47 {strides = array<i32>} : memref<1x16xf32, #tpu.memory_space<vmem>>, vector<1x16xf32>,
    return
  }
  func.func @transform_0(%arg0: i32) -> (i32, i32) {
    %c0_i32 = arith.constant 0 : i32
    %c0_i32_0 = arith.constant 0 : i32
    return %arg0, %c0_i32 : i32, i32
  }
  func.func @transform_1(%arg0: i32) -> (i32, i32) {
    %c0_i32 = arith.constant 0 : i32
    %c0_i32_0 = arith.constant 0 : i32
    return %arg0, %c0_i32 : i32, i32
  }
  func.func @transform_2(%arg0: i32) -> (i32, i32) {
    %c0_i32 = arith.constant 0 : i32
    %c0_i32_0 = arith.constant 0 : i32
    %c0_i32_1 = arith.constant 0 : i32
    return %c0_i32, %c0_i32_0 : i32, i32
  }
  func.func @transform_3(%arg0: i32) -> (i32, i32) {
    %c0_i32 = arith.constant 0 : i32
    %c0_i32_0 = arith.constant 0 : i32
    %c0_i32_1 = arith.constant 0 : i32
    return %c0_i32, %c0_i32_0 : i32, i32
  }
  func.func @transform_4(%arg0: i32) -> (i32, i32) {
    %c0_i32 = arith.constant 0 : i32
    %c0_i32_0 = arith.constant 0 : i32
    %c0_i32_1 = arith.constant 0 : i32
    return %c0_i32, %c0_i32_0 : i32, i32
  }
  func.func @transform_5(%arg0: i32) -> (i32, i32) {
    %c0_i32 = arith.constant 0 : i32
    %c0_i32_0 = arith.constant 0 : i32
    %c0_i32_1 = arith.constant 0 : i32
    return %c0_i32, %c0_i32_0 : i32, i32
  }
  func.func @transform_6(%arg0: i32) -> (i32, i32) {
    %c0_i32 = arith.constant 0 : i32
    %c0_i32_0 = arith.constant 0 : i32
    %c0_i32_1 = arith.constant 0 : i32
    return %c0_i32, %c0_i32_0 : i32, i32
  }
  func.func @transform_7(%arg0: i32) -> (i32, i32) {
    %c0_i32 = arith.constant 0 : i32
    %c0_i32_0 = arith.constant 0 : i32
    %c0_i32_1 = arith.constant 0 : i32
    return %c0_i32, %c0_i32_0 : i32, i32
  }
  func.func @transform_8(%arg0: i32) -> (i32, i32) {
    %c0_i32 = arith.constant 0 : i32
    %c0_i32_0 = arith.constant 0 : i32
    %c0_i32_1 = arith.constant 0 : i32
    return %c0_i32, %c0_i32_0 : i32, i32
  }
  func.func @transform_9(%arg0: i32) -> (i32, i32) {
    %c0_i32 = arith.constant 0 : i32
    %c0_i32_0 = arith.constant 0 : i32
    %c0_i32_1 = arith.constant 0 : i32
    return %c0_i32, %c0_i32_0 : i32, i32
  }
  func.func @transform_10(%arg0: i32) -> (i32, i32) {
    %c0_i32 = arith.constant 0 : i32
    %c0_i32_0 = arith.constant 0 : i32
    %c0_i32_1 = arith.constant 0 : i32
    return %c0_i32, %c0_i32_0 : i32, i32
  }
  func.func @transform_11(%arg0: i32) -> (i32, i32) {
    %c0_i32 = arith.constant 0 : i32
    %c0_i32_0 = arith.constant 0 : i32
    %c0_i32_1 = arith.constant 0 : i32
    return %c0_i32, %c0_i32_0 : i32, i32
  }
  func.func @transform_12(%arg0: i32) -> (i32, i32) {
    %c0_i32 = arith.constant 0 : i32
    %c0_i32_0 = arith.constant 0 : i32
    %c0_i32_1 = arith.constant 0 : i32
    return %c0_i32, %c0_i32_0 : i32, i32
  }
  func.func @transform_13(%arg0: i32) -> (i32, i32) {
    %c0_i32 = arith.constant 0 : i32
    %c0_i32_0 = arith.constant 0 : i32
    %c0_i32_1 = arith.constant 0 : i32
    return %c0_i32, %c0_i32_0 : i32, i32
  }
  func.func @transform_14(%arg0: i32) -> (i32, i32) {
    %c0_i32 = arith.constant 0 : i32
    %c0_i32_0 = arith.constant 0 : i32
    %c0_i32_1 = arith.constant 0 : i32
    return %c0_i32, %c0_i32_0 : i32, i32
  }
  func.func @transform_15(%arg0: i32) -> (i32, i32) {
    %c0_i32 = arith.constant 0 : i32
    %c0_i32_0 = arith.constant 0 : i32
    return %c0_i32, %arg0 : i32, i32
  }
}

</mosaic_0001>

<llo_original>
// kernel: two_tower_forward.1
$region0: #{two_tower_forward.1}
  #allocation0 [shape = 'u32[]', space=smem, size = 0x4, offset = 0x4, fixed_abs, tag = 'smem constant byte address 0x4 - core index']
  #allocation1 [shape = 'u32[144,128]{1,0:T(1,128)}', space=vmem, size = 0x12000, scoped, tag = 'internal scratch']
  #allocation2 [shape = 'f32[1,1]{1,0:T(1,128)S(1)}', space=vmem, size = 0x200, scoped, tag = 'scoped memory for two_tower_forward.1']
  %s0 = inlined_call_operand.vmem [shape: f32[16,12], index: 0, kind: input, shape index: {}]
  %s1 = inlined_call_operand.vmem [shape: f32[16,20], index: 1, kind: input, shape index: {}]
  %s2 = inlined_call_operand.vmem [shape: f32[32,12], index: 2, kind: input, shape index: {}]
  %s3 = inlined_call_operand.vmem [shape: f32[32,1], index: 3, kind: input, shape index: {}]
  %s4 = inlined_call_operand.vmem [shape: f32[16,32], index: 4, kind: input, shape index: {}]
  %s5 = inlined_call_operand.vmem [shape: f32[16,1], index: 5, kind: input, shape index: {}]
  %s6 = inlined_call_operand.vmem [shape: f32[32,20], index: 6, kind: input, shape index: {}]
  %s7 = inlined_call_operand.vmem [shape: f32[32,1], index: 7, kind: input, shape index: {}]
  %s8 = inlined_call_operand.vmem [shape: f32[16,32], index: 8, kind: input, shape index: {}]
  %s9 = inlined_call_operand.vmem [shape: f32[16,1], index: 9, kind: input, shape index: {}]
  %s10 = inlined_call_operand.vmem [shape: f32[16,16], index: 10, kind: input, shape index: {}]
  %s11 = inlined_call_operand.vmem [shape: f32[16,16], index: 11, kind: input, shape index: {}]
  %s12 = inlined_call_operand.vmem [shape: f32[16,1], index: 12, kind: input, shape index: {}]
  %s13 = inlined_call_operand.vmem [shape: f32[16,1], index: 13, kind: input, shape index: {}]
  %s14 = inlined_call_operand.<no memory space> [shape: f32[1,1], index: 14, kind: input, shape index: {}]
  %s15 = inlined_call_operand.hbm [shape: f32[1,16], index: 15, kind: output, shape index: {}]
  %s16 = sld [smem:[#allocation0]]
  $region70: #{two_tower_forward.1} parent=0
    _
  %s18 = ssub.s32 1, %s16
  %s19 = scalar_select 0, %s18, %s16
  %v20 = vstv %s14
  %21 = vst [vmem:[#allocation2] sm:$0x1] %v20
  $region1: #{two_tower_forward.1} parent=0
    #allocation3 [shape = 'u8[512]{0}', space=vmem, size = 0x400, scoped, tag = 'output window, operand 0, single buffered']
    #allocation4 [shape = 's32[1]{0}', space=sflag, size = 0x4, scoped, tag = 'scoped memory for two_tower_forward.1']
    %22 = vsyncpa [#allocation4], 0
    // Predicated region
    $region2: #{two_tower_forward.1} parent=1 // pred_check
      _
    $region3: #{two_tower_forward.1} parent=1 // pred_check_branch
      %24 = sbr.rel (0) target = $region5
    $region4: #{two_tower_forward.1} parent=1 // pred_region
      _
    $region5: #{two_tower_forward.1} parent=1 // pred_fallthru
      _
    // Predicated region
    $region6: #{two_tower_forward.1} parent=1 // pred_check
      _
    $region7: #{two_tower_forward.1} parent=1 // pred_check_branch
      %26 = sbr.rel (0) target = $region9
    $region8: #{two_tower_forward.1} parent=1 // pred_region
      _
    $region9: #{two_tower_forward.1} parent=1 // pred_fallthru
      _
    // Predicated region
    $region10: #{two_tower_forward.1} parent=1 // pred_check
      _
    $region11: #{two_tower_forward.1} parent=1 // pred_check_branch
      %28 = sbr.rel (0) target = $region13
    $region12: #{two_tower_forward.1} parent=1 // pred_region
      _
    $region13: #{two_tower_forward.1} parent=1 // pred_fallthru
      _
    // Predicated region
    $region14: #{two_tower_forward.1} parent=1 // pred_check
      _
    $region15: #{two_tower_forward.1} parent=1 // pred_check_branch
      %30 = sbr.rel (0) target = $region17
    $region16: #{two_tower_forward.1} parent=1 // pred_region
      _
    $region17: #{two_tower_forward.1} parent=1 // pred_fallthru
      _
    // Predicated region
    $region18: #{two_tower_forward.1} parent=1 // pred_check
      _
    $region19: #{two_tower_forward.1} parent=1 // pred_check_branch
      %32 = sbr.rel (0) target = $region21
    $region20: #{two_tower_forward.1} parent=1 // pred_region
      _
    $region21: #{two_tower_forward.1} parent=1 // pred_fallthru
      _
    // Predicated region
    $region22: #{two_tower_forward.1} parent=1 // pred_check
      _
    $region23: #{two_tower_forward.1} parent=1 // pred_check_branch
      %34 = sbr.rel (0) target = $region25
    $region24: #{two_tower_forward.1} parent=1 // pred_region
      _
    $region25: #{two_tower_forward.1} parent=1 // pred_fallthru
      _
    // Predicated region
    $region26: #{two_tower_forward.1} parent=1 // pred_check
      _
    $region27: #{two_tower_forward.1} parent=1 // pred_check_branch
      %36 = sbr.rel (0) target = $region29
    $region28: #{two_tower_forward.1} parent=1 // pred_region
      _
    $region29: #{two_tower_forward.1} parent=1 // pred_fallthru
      _
    // Predicated region
    $region30: #{two_tower_forward.1} parent=1 // pred_check
      _
    $region31: #{two_tower_forward.1} parent=1 // pred_check_branch
      %38 = sbr.rel (0) target = $region33
    $region32: #{two_tower_forward.1} parent=1 // pred_region
      _
    $region33: #{two_tower_forward.1} parent=1 // pred_fallthru
      _
    // Predicated region
    $region34: #{two_tower_forward.1} parent=1 // pred_check
      _
    $region35: #{two_tower_forward.1} parent=1 // pred_check_branch
      %40 = sbr.rel (0) target = $region37
    $region36: #{two_tower_forward.1} parent=1 // pred_region
      _
    $region37: #{two_tower_forward.1} parent=1 // pred_fallthru
      _
    // Predicated region
    $region38: #{two_tower_forward.1} parent=1 // pred_check
      _
    $region39: #{two_tower_forward.1} parent=1 // pred_check_branch
      %42 = sbr.rel (0) target = $region41
    $region40: #{two_tower_forward.1} parent=1 // pred_region
      _
    $region41: #{two_tower_forward.1} parent=1 // pred_fallthru
      _
    // Predicated region
    $region42: #{two_tower_forward.1} parent=1 // pred_check
      _
    $region43: #{two_tower_forward.1} parent=1 // pred_check_branch
      %44 = sbr.rel (0) target = $region45
    $region44: #{two_tower_forward.1} parent=1 // pred_region
      _
    $region45: #{two_tower_forward.1} parent=1 // pred_fallthru
      _
    // Predicated region
    $region46: #{two_tower_forward.1} parent=1 // pred_check
      _
    $region47: #{two_tower_forward.1} parent=1 // pred_check_branch
      %46 = sbr.rel (0) target = $region49
    $region48: #{two_tower_forward.1} parent=1 // pred_region
      _
    $region49: #{two_tower_forward.1} parent=1 // pred_fallthru
      _
    // Predicated region
    $region50: #{two_tower_forward.1} parent=1 // pred_check
      _
    $region51: #{two_tower_forward.1} parent=1 // pred_check_branch
      %48 = sbr.rel (0) target = $region53
    $region52: #{two_tower_forward.1} parent=1 // pred_region
      _
    $region53: #{two_tower_forward.1} parent=1 // pred_fallthru
      _
    // Predicated region
    $region54: #{two_tower_forward.1} parent=1 // pred_check
      _
    $region55: #{two_tower_forward.1} parent=1 // pred_check_branch
      %50 = sbr.rel (0) target = $region57
    $region56: #{two_tower_forward.1} parent=1 // pred_region
      _
    $region57: #{two_tower_forward.1} parent=1 // pred_fallthru
      _
    // Predicated region
    $region58: #{two_tower_forward.1} parent=1 // pred_check
      _
    $region59: #{two_tower_forward.1} parent=1 // pred_check_branch
      %52 = sbr.rel (0) target = $region61
    $region60: #{two_tower_forward.1} parent=1 // pred_region
      _
    $region61: #{two_tower_forward.1} parent=1 // pred_fallthru
      _
    %v53 = vld [vmem:[%s2] sm:$0xff]
    %v54 = vld [vmem:[%s2 + $0x8] sm:$0xff]
    %v55 = vld [vmem:[%s2 + $0x10] sm:$0xff]
    %v56 = vld [vmem:[%s2 + $0x18] sm:$0xff]
    %v57 = vld [vmem:[%s0] sm:$0xff]
    %v58 = vld [vmem:[%s0 + $0x8] sm:$0xff]
    %v59 = vld [vmem:[%s3] sm:$0xff]
    %v60 = vld [vmem:[%s3 + $0x8] sm:$0xff]
    %v61 = vld [vmem:[%s3 + $0x10] sm:$0xff]
    %v62 = vld [vmem:[%s3 + $0x18] sm:$0xff]
    %64 = vset.pattern.permute.xlu0 0
    %65 = vperm.xlu0 %64, %v59
    %v66 = vpop.permute.xlu0 %65
    %69 = vset.pattern.permute.xlu0 0
    %70 = vperm.xlu0 %69, %v60
    %v71 = vpop.permute.xlu0 %70
    %74 = vset.pattern.permute.xlu0 0
    %75 = vperm.xlu0 %74, %v61
    %v76 = vpop.permute.xlu0 %75
    %79 = vset.pattern.permute.xlu0 0
    %80 = vperm.xlu0 %79, %v62
    %v81 = vpop.permute.xlu0 %80
    %vm83 = vcmask 97280
    %v85 = vsel %vm83, %v53, 0
    %v88 = vsel %vm83, %v54, 0
    %v91 = vsel %vm83, %v55, 0
    %v94 = vsel %vm83, %v56, 0
    %v97 = vsel %vm83, %v57, 0
    %v100 = vsel %vm83, %v58, 0
    %102 = vmatprep.subr.mxu0 0.0
    %103 = vmatpush1.xpose.msra.mxu0 0.0
    %104 = vmatprep.subr.mxu0 0.0
    %105 = vmatpush1.xpose.msra.mxu0 0.0
    %106 = vmatprep.subr.mxu0 0.0
    %107 = vmatpush1.xpose.msra.mxu0 0.0
    %108 = vmatprep.subr.mxu0 0.0
    %109 = vmatpush1.xpose.msra.mxu0 0.0
    %110 = vmatprep.subr.mxu0 0.0
    %111 = vmatpush1.xpose.msra.mxu0 0.0
    %112 = vmatprep.subr.mxu0 0.0
    %113 = vmatpush1.xpose.msra.mxu0 0.0
    %114 = vmatprep.subr.mxu0 0.0
    %115 = vmatpush1.xpose.msra.mxu0 0.0
    %116 = vmatprep.subr.mxu0 0.0
    %117 = vmatpush1.xpose.msra.mxu0 0.0
    %118 = vmatprep.subr.mxu0 0.0
    %119 = vmatpush1.xpose.msra.mxu0 0.0
    %120 = vmatprep.subr.mxu0 0.0
    %121 = vmatpush1.xpose.msra.mxu0 0.0
    %122 = vmatprep.subr.mxu0 0.0
    %123 = vmatpush1.xpose.msra.mxu0 0.0
    %124 = vmatprep.subr.mxu0 0.0
    %125 = vmatpush1.xpose.msra.mxu0 0.0
    %126 = vmatprep.subr.mxu0 0.0
    %127 = vmatpush1.xpose.msra.mxu0 0.0
    %128 = vmatprep.subr.mxu0 0.0
    %129 = vmatpush1.xpose.msra.mxu0 0.0
    %130 = vmatprep.subr.mxu0 0.0
    %131 = vmatpush1.xpose.msra.mxu0 %v100
    %132 = vmatprep.subr.mxu0 0.0
    %133 = vmatpush1.xpose.msra.mxu0 %v97
    %134 = vmatprep.subr.mxu0 0.0
    %135 = vmatpush2.xpose.msra.mxu0 0.0
    %136 = vmatprep.subr.mxu0 0.0
    %137 = vmatpush2.xpose.msra.mxu0 0.0
    %138 = vmatprep.subr.mxu0 0.0
    %139 = vmatpush2.xpose.msra.mxu0 0.0
    %140 = vmatprep.subr.mxu0 0.0
    %141 = vmatpush2.xpose.msra.mxu0 0.0
    %142 = vmatprep.subr.mxu0 0.0
    %143 = vmatpush2.xpose.msra.mxu0 0.0
    %144 = vmatprep.subr.mxu0 0.0
    %145 = vmatpush2.xpose.msra.mxu0 0.0
    %146 = vmatprep.subr.mxu0 0.0
    %147 = vmatpush2.xpose.msra.mxu0 0.0
    %148 = vmatprep.subr.mxu0 0.0
    %149 = vmatpush2.xpose.msra.mxu0 0.0
    %150 = vmatprep.subr.mxu0 0.0
    %151 = vmatpush2.xpose.msra.mxu0 0.0
    %152 = vmatprep.subr.mxu0 0.0
    %153 = vmatpush2.xpose.msra.mxu0 0.0
    %154 = vmatprep.subr.mxu0 0.0
    %155 = vmatpush2.xpose.msra.mxu0 0.0
    %156 = vmatprep.subr.mxu0 0.0
    %157 = vmatpush2.xpose.msra.mxu0 0.0
    %158 = vmatprep.subr.mxu0 0.0
    %159 = vmatpush2.xpose.msra.mxu0 0.0
    %160 = vmatprep.subr.mxu0 0.0
    %161 = vmatpush2.xpose.msra.mxu0 0.0
    %162 = vmatprep.subr.mxu0 0.0
    %163 = vmatpush2.xpose.msra.mxu0 0.0
    %164 = vmatprep.subr.mxu0 0.0
    %165 = vmatpush2.xpose.msra.mxu0 0.0
    %166 = vmatprep.mubr.f32.mxu0 0.0
    %167 = vmatmul.mubr.f32.gmra.mxu0 %v85
    %v168 = vpop.f32.mrf.mxu0
    %v169 = vadd.f32 %v66, %v168
    %v170 = vpop.f32.mrf.mxu0
    %171 = vmatprep.mubr.f32.mxu0 0.0
    %172 = vmatmul.mubr.f32.gmra.mxu0 %v88
    %v173 = vpop.f32.mrf.mxu0
    %v174 = vadd.f32 %v71, %v173
    %v175 = vpop.f32.mrf.mxu0
    %176 = vmatprep.mubr.f32.mxu0 0.0
    %177 = vmatmul.mubr.f32.gmra.mxu0 %v91
    %v178 = vpop.f32.mrf.mxu0
    %v179 = vadd.f32 %v76, %v178
    %v180 = vpop.f32.mrf.mxu0
    %181 = vmatprep.mubr.f32.mxu0 0.0
    %182 = vmatmul.mubr.f32.gmra.mxu0 %v94
    %v183 = vpop.f32.mrf.mxu0
    %v184 = vadd.f32 %v81, %v183
    %v185 = vpop.f32.mrf.mxu0
    %186 = vdwg.mxu0
    %v187 = vld [vmem:[%s6] sm:$0xff]
    %v188 = vld [vmem:[%s6 + $0x8] sm:$0xff]
    %v189 = vld [vmem:[%s6 + $0x10] sm:$0xff]
    %v190 = vld [vmem:[%s6 + $0x18] sm:$0xff]
    %v191 = vld [vmem:[%s1] sm:$0xff]
    %v192 = vld [vmem:[%s1 + $0x8] sm:$0xff]
    %v193 = vld [vmem:[%s7] sm:$0xff]
    %v194 = vld [vmem:[%s7 + $0x8] sm:$0xff]
    %v195 = vld [vmem:[%s7 + $0x10] sm:$0xff]
    %v196 = vld [vmem:[%s7 + $0x18] sm:$0xff]
    %198 = vset.pattern.permute.xlu0 0
    %199 = vperm.xlu0 %198, %v193
    %v200 = vpop.permute.xlu0 %199
    %203 = vset.pattern.permute.xlu0 0
    %204 = vperm.xlu0 %203, %v194
    %v205 = vpop.permute.xlu0 %204
    %208 = vset.pattern.permute.xlu0 0
    %209 = vperm.xlu0 %208, %v195
    %v210 = vpop.permute.xlu0 %209
    %213 = vset.pattern.permute.xlu0 0
    %214 = vperm.xlu0 %213, %v196
    %v215 = vpop.permute.xlu0 %214
    %vm217 = vcmask 162816
    %v219 = vsel %vm217, %v187, 0
    %v222 = vsel %vm217, %v188, 0
    %v225 = vsel %vm217, %v189, 0
    %v228 = vsel %vm217, %v190, 0
    %v231 = vsel %vm217, %v191, 0
    %v234 = vsel %vm217, %v192, 0
    %236 = vmatprep.subr.mxu0 0.0
    %237 = vmatpush1.xpose.msra.mxu0 0.0
    %238 = vmatprep.subr.mxu0 0.0
    %239 = vmatpush1.xpose.msra.mxu0 0.0
    %240 = vmatprep.subr.mxu0 0.0
    %241 = vmatpush1.xpose.msra.mxu0 0.0
    %242 = vmatprep.subr.mxu0 0.0
    %243 = vmatpush1.xpose.msra.mxu0 0.0
    %244 = vmatprep.subr.mxu0 0.0
    %245 = vmatpush1.xpose.msra.mxu0 0.0
    %246 = vmatprep.subr.mxu0 0.0
    %247 = vmatpush1.xpose.msra.mxu0 0.0
    %248 = vmatprep.subr.mxu0 0.0
    %249 = vmatpush1.xpose.msra.mxu0 0.0
    %250 = vmatprep.subr.mxu0 0.0
    %251 = vmatpush1.xpose.msra.mxu0 0.0
    %252 = vmatprep.subr.mxu0 0.0
    %253 = vmatpush1.xpose.msra.mxu0 0.0
    %254 = vmatprep.subr.mxu0 0.0
    %255 = vmatpush1.xpose.msra.mxu0 0.0
    %256 = vmatprep.subr.mxu0 0.0
    %257 = vmatpush1.xpose.msra.mxu0 0.0
    %258 = vmatprep.subr.mxu0 0.0
    %259 = vmatpush1.xpose.msra.mxu0 0.0
    %260 = vmatprep.subr.mxu0 0.0
    %261 = vmatpush1.xpose.msra.mxu0 0.0
    %262 = vmatprep.subr.mxu0 0.0
    %263 = vmatpush1.xpose.msra.mxu0 0.0
    %264 = vmatprep.subr.mxu0 0.0
    %265 = vmatpush1.xpose.msra.mxu0 %v234
    %266 = vmatprep.subr.mxu0 0.0
    %267 = vmatpush1.xpose.msra.mxu0 %v231
    %268 = vmatprep.subr.mxu0 0.0
    %269 = vmatpush2.xpose.msra.mxu0 0.0
    %270 = vmatprep.subr.mxu0 0.0
    %271 = vmatpush2.xpose.msra.mxu0 0.0
    %272 = vmatprep.subr.mxu0 0.0
    %273 = vmatpush2.xpose.msra.mxu0 0.0
    %274 = vmatprep.subr.mxu0 0.0
    %275 = vmatpush2.xpose.msra.mxu0 0.0
    %276 = vmatprep.subr.mxu0 0.0
    %277 = vmatpush2.xpose.msra.mxu0 0.0
    %278 = vmatprep.subr.mxu0 0.0
    %279 = vmatpush2.xpose.msra.mxu0 0.0
    %280 = vmatprep.subr.mxu0 0.0
    %281 = vmatpush2.xpose.msra.mxu0 0.0
    %282 = vmatprep.subr.mxu0 0.0
    %283 = vmatpush2.xpose.msra.mxu0 0.0
    %284 = vmatprep.subr.mxu0 0.0
    %285 = vmatpush2.xpose.msra.mxu0 0.0
    %286 = vmatprep.subr.mxu0 0.0
    %287 = vmatpush2.xpose.msra.mxu0 0.0
    %288 = vmatprep.subr.mxu0 0.0
    %289 = vmatpush2.xpose.msra.mxu0 0.0
    %290 = vmatprep.subr.mxu0 0.0
    %291 = vmatpush2.xpose.msra.mxu0 0.0
    %292 = vmatprep.subr.mxu0 0.0
    %293 = vmatpush2.xpose.msra.mxu0 0.0
    %294 = vmatprep.subr.mxu0 0.0
    %295 = vmatpush2.xpose.msra.mxu0 0.0
    %296 = vmatprep.subr.mxu0 0.0
    %297 = vmatpush2.xpose.msra.mxu0 0.0
    %298 = vmatprep.subr.mxu0 0.0
    %299 = vmatpush2.xpose.msra.mxu0 0.0
    %300 = vmatprep.mubr.f32.mxu0 0.0
    %301 = vmatmul.mubr.f32.gmra.mxu0 %v219
    %v302 = vpop.f32.mrf.mxu0
    %v303 = vadd.f32 %v200, %v302
    %v304 = vpop.f32.mrf.mxu0
    %305 = vmatprep.mubr.f32.mxu0 0.0
    %306 = vmatmul.mubr.f32.gmra.mxu0 %v222
    %v307 = vpop.f32.mrf.mxu0
    %v308 = vadd.f32 %v205, %v307
    %v309 = vpop.f32.mrf.mxu0
    %310 = vmatprep.mubr.f32.mxu0 0.0
    %311 = vmatmul.mubr.f32.gmra.mxu0 %v225
    %v312 = vpop.f32.mrf.mxu0
    %v313 = vadd.f32 %v210, %v312
    %v314 = vpop.f32.mrf.mxu0
    %315 = vmatprep.mubr.f32.mxu0 0.0
    %316 = vmatmul.mubr.f32.gmra.mxu0 %v228
    %v317 = vpop.f32.mrf.mxu0
    %v318 = vadd.f32 %v215, %v317
    %v319 = vpop.f32.mrf.mxu0
    %320 = vdwg.mxu0
    %v321 = vmax.f32 %v169, 0.0
    %v322 = vmax.f32 %v174, 0.0
    %v323 = vmax.f32 %v179, 0.0
    %v324 = vmax.f32 %v184, 0.0
    %v325 = vmax.f32 %v303, 0.0
    %v326 = vmax.f32 %v308, 0.0
    %v327 = vmax.f32 %v313, 0.0
    %v328 = vmax.f32 %v318, 0.0
    %v329 = vld [vmem:[%s4] sm:$0xff]
    %v330 = vld [vmem:[%s4 + $0x8] sm:$0xff]
    %v331 = vld [vmem:[%s5] sm:$0xff]
    %v332 = vld [vmem:[%s5 + $0x8] sm:$0xff]
    %334 = vset.pattern.permute.xlu0 0
    %335 = vperm.xlu0 %334, %v331
    %v336 = vpop.permute.xlu0 %335
    %339 = vset.pattern.permute.xlu0 0
    %340 = vperm.xlu0 %339, %v332
    %v341 = vpop.permute.xlu0 %340
    %vm343 = vcmask 261120
    %v345 = vsel %vm343, %v329, 0
    %v348 = vsel %vm343, %v330, 0
    %350 = vmatprep.subr.mxu0 0.0
    %351 = vmatpush1.msra.mxu0 0.0
    %352 = vmatprep.subr.mxu0 0.0
    %353 = vmatpush1.msra.mxu0 0.0
    %354 = vmatprep.subr.mxu0 0.0
    %355 = vmatpush1.msra.mxu0 0.0
    %356 = vmatprep.subr.mxu0 0.0
    %357 = vmatpush1.msra.mxu0 0.0
    %358 = vmatprep.subr.mxu0 0.0
    %359 = vmatpush1.msra.mxu0 0.0
    %360 = vmatprep.subr.mxu0 0.0
    %361 = vmatpush1.msra.mxu0 0.0
    %362 = vmatprep.subr.mxu0 0.0
    %363 = vmatpush1.msra.mxu0 0.0
    %364 = vmatprep.subr.mxu0 0.0
    %365 = vmatpush1.msra.mxu0 0.0
    %366 = vmatprep.subr.mxu0 0.0
    %367 = vmatpush1.msra.mxu0 0.0
    %368 = vmatprep.subr.mxu0 0.0
    %369 = vmatpush1.msra.mxu0 0.0
    %370 = vmatprep.subr.mxu0 0.0
    %371 = vmatpush1.msra.mxu0 0.0
    %372 = vmatprep.subr.mxu0 0.0
    %373 = vmatpush1.msra.mxu0 0.0
    %374 = vmatprep.subr.mxu0 0.0
    %375 = vmatpush1.msra.mxu0 %v324
    %376 = vmatprep.subr.mxu0 0.0
    %377 = vmatpush1.msra.mxu0 %v323
    %378 = vmatprep.subr.mxu0 0.0
    %379 = vmatpush1.msra.mxu0 %v322
    %380 = vmatprep.subr.mxu0 0.0
    %381 = vmatpush1.msra.mxu0 %v321
    %382 = vmatprep.subr.mxu0 0.0
    %383 = vmatpush2.msra.mxu0 0.0
    %384 = vmatprep.subr.mxu0 0.0
    %385 = vmatpush2.msra.mxu0 0.0
    %386 = vmatprep.subr.mxu0 0.0
    %387 = vmatpush2.msra.mxu0 0.0
    %388 = vmatprep.subr.mxu0 0.0
    %389 = vmatpush2.msra.mxu0 0.0
    %390 = vmatprep.subr.mxu0 0.0
    %391 = vmatpush2.msra.mxu0 0.0
    %392 = vmatprep.subr.mxu0 0.0
    %393 = vmatpush2.msra.mxu0 0.0
    %394 = vmatprep.subr.mxu0 0.0
    %395 = vmatpush2.msra.mxu0 0.0
    %396 = vmatprep.subr.mxu0 0.0
    %397 = vmatpush2.msra.mxu0 0.0
    %398 = vmatprep.subr.mxu0 0.0
    %399 = vmatpush2.msra.mxu0 0.0
    %400 = vmatprep.subr.mxu0 0.0
    %401 = vmatpush2.msra.mxu0 0.0
    %402 = vmatprep.subr.mxu0 0.0
    %403 = vmatpush2.msra.mxu0 0.0
    %404 = vmatprep.subr.mxu0 0.0
    %405 = vmatpush2.msra.mxu0 0.0
    %406 = vmatprep.subr.mxu0 0.0
    %407 = vmatpush2.msra.mxu0 0.0
    %408 = vmatprep.subr.mxu0 0.0
    %409 = vmatpush2.msra.mxu0 0.0
    %410 = vmatprep.subr.mxu0 0.0
    %411 = vmatpush2.msra.mxu0 0.0
    %412 = vmatprep.subr.mxu0 0.0
    %413 = vmatpush2.msra.mxu0 0.0
    %414 = vmatprep.mubr.f32.mxu0 0.0
    %415 = vmatmul.mubr.f32.gmra.mxu0 %v345
    %v416 = vpop.f32.mrf.mxu0
    %v417 = vadd.f32 %v336, %v416
    %v418 = vpop.f32.mrf.mxu0
    %419 = vmatprep.mubr.f32.mxu0 0.0
    %420 = vmatmul.mubr.f32.gmra.mxu0 %v348
    %v421 = vpop.f32.mrf.mxu0
    %v422 = vadd.f32 %v341, %v421
    %v423 = vpop.f32.mrf.mxu0
    %424 = vdwg.mxu0
    %v425 = vmax.f32 %v417, 0.0
    %v426 = vmax.f32 %v422, 0.0
    %v427 = vld [vmem:[%s8] sm:$0xff]
    %v428 = vld [vmem:[%s8 + $0x8] sm:$0xff]
    %v429 = vld [vmem:[%s9] sm:$0xff]
    %v430 = vld [vmem:[%s9 + $0x8] sm:$0xff]
    %432 = vset.pattern.permute.xlu0 0
    %433 = vperm.xlu0 %432, %v429
    %v434 = vpop.permute.xlu0 %433
    %437 = vset.pattern.permute.xlu0 0
    %438 = vperm.xlu0 %437, %v430
    %v439 = vpop.permute.xlu0 %438
    %v442 = vsel %vm343, %v427, 0
    %v445 = vsel %vm343, %v428, 0
    %447 = vmatprep.subr.mxu0 0.0
    %448 = vmatpush1.msra.mxu0 0.0
    %449 = vmatprep.subr.mxu0 0.0
    %450 = vmatpush1.msra.mxu0 0.0
    %451 = vmatprep.subr.mxu0 0.0
    %452 = vmatpush1.msra.mxu0 0.0
    %453 = vmatprep.subr.mxu0 0.0
    %454 = vmatpush1.msra.mxu0 0.0
    %455 = vmatprep.subr.mxu0 0.0
    %456 = vmatpush1.msra.mxu0 0.0
    %457 = vmatprep.subr.mxu0 0.0
    %458 = vmatpush1.msra.mxu0 0.0
    %459 = vmatprep.subr.mxu0 0.0
    %460 = vmatpush1.msra.mxu0 0.0
    %461 = vmatprep.subr.mxu0 0.0
    %462 = vmatpush1.msra.mxu0 0.0
    %463 = vmatprep.subr.mxu0 0.0
    %464 = vmatpush1.msra.mxu0 0.0
    %465 = vmatprep.subr.mxu0 0.0
    %466 = vmatpush1.msra.mxu0 0.0
    %467 = vmatprep.subr.mxu0 0.0
    %468 = vmatpush1.msra.mxu0 0.0
    %469 = vmatprep.subr.mxu0 0.0
    %470 = vmatpush1.msra.mxu0 0.0
    %471 = vmatprep.subr.mxu0 0.0
    %472 = vmatpush1.msra.mxu0 %v328
    %473 = vmatprep.subr.mxu0 0.0
    %474 = vmatpush1.msra.mxu0 %v327
    %475 = vmatprep.subr.mxu0 0.0
    %476 = vmatpush1.msra.mxu0 %v326
    %477 = vmatprep.subr.mxu0 0.0
    %478 = vmatpush1.msra.mxu0 %v325
    %479 = vmatprep.subr.mxu0 0.0
    %480 = vmatpush2.msra.mxu0 0.0
    %481 = vmatprep.subr.mxu0 0.0
    %482 = vmatpush2.msra.mxu0 0.0
    %483 = vmatprep.subr.mxu0 0.0
    %484 = vmatpush2.msra.mxu0 0.0
    %485 = vmatprep.subr.mxu0 0.0
    %486 = vmatpush2.msra.mxu0 0.0
    %487 = vmatprep.subr.mxu0 0.0
    %488 = vmatpush2.msra.mxu0 0.0
    %489 = vmatprep.subr.mxu0 0.0
    %490 = vmatpush2.msra.mxu0 0.0
    %491 = vmatprep.subr.mxu0 0.0
    %492 = vmatpush2.msra.mxu0 0.0
    %493 = vmatprep.subr.mxu0 0.0
    %494 = vmatpush2.msra.mxu0 0.0
    %495 = vmatprep.subr.mxu0 0.0
    %496 = vmatpush2.msra.mxu0 0.0
    %497 = vmatprep.subr.mxu0 0.0
    %498 = vmatpush2.msra.mxu0 0.0
    %499 = vmatprep.subr.mxu0 0.0
    %500 = vmatpush2.msra.mxu0 0.0
    %501 = vmatprep.subr.mxu0 0.0
    %502 = vmatpush2.msra.mxu0 0.0
    %503 = vmatprep.subr.mxu0 0.0
    %504 = vmatpush2.msra.mxu0 0.0
    %505 = vmatprep.subr.mxu0 0.0
    %506 = vmatpush2.msra.mxu0 0.0
    %507 = vmatprep.subr.mxu0 0.0
    %508 = vmatpush2.msra.mxu0 0.0
    %509 = vmatprep.subr.mxu0 0.0
    %510 = vmatpush2.msra.mxu0 0.0
    %511 = vmatprep.mubr.f32.mxu0 0.0
    %512 = vmatmul.mubr.f32.gmra.mxu0 %v442
    %v513 = vpop.f32.mrf.mxu0
    %v514 = vadd.f32 %v434, %v513
    %v515 = vpop.f32.mrf.mxu0
    %516 = vmatprep.mubr.f32.mxu0 0.0
    %517 = vmatmul.mubr.f32.gmra.mxu0 %v445
    %v518 = vpop.f32.mrf.mxu0
    %v519 = vadd.f32 %v439, %v518
    %v520 = vpop.f32.mrf.mxu0
    %521 = vdwg.mxu0
    %v522 = vmax.f32 %v514, 0.0
    %v523 = vmax.f32 %v519, 0.0
    %v524 = vld [vmem:[%s10] sm:$0xff]
    %v525 = vld [vmem:[%s10 + $0x8] sm:$0xff]
    %v526 = vld [vmem:[%s11] sm:$0xff]
    %v527 = vld [vmem:[%s11 + $0x8] sm:$0xff]
    %vm528 = vcmask 130048
    %v530 = vsel %vm528, %v526, 0
    %v533 = vsel %vm528, %v527, 0
    %535 = vmatprep.subr.mxu0 0.0
    %536 = vmatpush1.msra.mxu0 0.0
    %537 = vmatprep.subr.mxu0 0.0
    %538 = vmatpush1.msra.mxu0 0.0
    %539 = vmatprep.subr.mxu0 0.0
    %540 = vmatpush1.msra.mxu0 0.0
    %541 = vmatprep.subr.mxu0 0.0
    %542 = vmatpush1.msra.mxu0 0.0
    %543 = vmatprep.subr.mxu0 0.0
    %544 = vmatpush1.msra.mxu0 0.0
    %545 = vmatprep.subr.mxu0 0.0
    %546 = vmatpush1.msra.mxu0 0.0
    %547 = vmatprep.subr.mxu0 0.0
    %548 = vmatpush1.msra.mxu0 0.0
    %549 = vmatprep.subr.mxu0 0.0
    %550 = vmatpush1.msra.mxu0 0.0
    %551 = vmatprep.subr.mxu0 0.0
    %552 = vmatpush1.msra.mxu0 0.0
    %553 = vmatprep.subr.mxu0 0.0
    %554 = vmatpush1.msra.mxu0 0.0
    %555 = vmatprep.subr.mxu0 0.0
    %556 = vmatpush1.msra.mxu0 0.0
    %557 = vmatprep.subr.mxu0 0.0
    %558 = vmatpush1.msra.mxu0 0.0
    %559 = vmatprep.subr.mxu0 0.0
    %560 = vmatpush1.msra.mxu0 0.0
    %561 = vmatprep.subr.mxu0 0.0
    %562 = vmatpush1.msra.mxu0 0.0
    %563 = vmatprep.subr.mxu0 0.0
    %564 = vmatpush1.msra.mxu0 %v523
    %565 = vmatprep.subr.mxu0 0.0
    %566 = vmatpush1.msra.mxu0 %v522
    %567 = vmatprep.subr.mxu0 0.0
    %568 = vmatpush2.msra.mxu0 0.0
    %569 = vmatprep.subr.mxu0 0.0
    %570 = vmatpush2.msra.mxu0 0.0
    %571 = vmatprep.subr.mxu0 0.0
    %572 = vmatpush2.msra.mxu0 0.0
    %573 = vmatprep.subr.mxu0 0.0
    %574 = vmatpush2.msra.mxu0 0.0
    %575 = vmatprep.subr.mxu0 0.0
    %576 = vmatpush2.msra.mxu0 0.0
    %577 = vmatprep.subr.mxu0 0.0
    %578 = vmatpush2.msra.mxu0 0.0
    %579 = vmatprep.subr.mxu0 0.0
    %580 = vmatpush2.msra.mxu0 0.0
    %581 = vmatprep.subr.mxu0 0.0
    %582 = vmatpush2.msra.mxu0 0.0
    %583 = vmatprep.subr.mxu0 0.0
    %584 = vmatpush2.msra.mxu0 0.0
    %585 = vmatprep.subr.mxu0 0.0
    %586 = vmatpush2.msra.mxu0 0.0
    %587 = vmatprep.subr.mxu0 0.0
    %588 = vmatpush2.msra.mxu0 0.0
    %589 = vmatprep.subr.mxu0 0.0
    %590 = vmatpush2.msra.mxu0 0.0
    %591 = vmatprep.subr.mxu0 0.0
    %592 = vmatpush2.msra.mxu0 0.0
    %593 = vmatprep.subr.mxu0 0.0
    %594 = vmatpush2.msra.mxu0 0.0
    %595 = vmatprep.subr.mxu0 0.0
    %596 = vmatpush2.msra.mxu0 0.0
    %597 = vmatprep.subr.mxu0 0.0
    %598 = vmatpush2.msra.mxu0 0.0
    %599 = vmatprep.mubr.f32.mxu0 0.0
    %600 = vmatmul.mubr.f32.gmra.mxu0 %v530
    %v601 = vpop.f32.mrf.mxu0
    %v602 = vadd.f32 0.0, %v601
    %v603 = vpop.f32.mrf.mxu0
    %604 = vmatprep.mubr.f32.mxu0 0.0
    %605 = vmatmul.mubr.f32.gmra.mxu0 %v533
    %v606 = vpop.f32.mrf.mxu0
    %v607 = vadd.f32 0.0, %v606
    %v608 = vpop.f32.mrf.mxu0
    %609 = vdwg.mxu0
    %v611 = vsel %vm528, %v524, 0
    %v614 = vsel %vm528, %v525, 0
    %616 = vmatprep.subr.mxu0 0.0
    %617 = vmatpush1.msra.mxu0 0.0
    %618 = vmatprep.subr.mxu0 0.0
    %619 = vmatpush1.msra.mxu0 0.0
    %620 = vmatprep.subr.mxu0 0.0
    %621 = vmatpush1.msra.mxu0 0.0
    %622 = vmatprep.subr.mxu0 0.0
    %623 = vmatpush1.msra.mxu0 0.0
    %624 = vmatprep.subr.mxu0 0.0
    %625 = vmatpush1.msra.mxu0 0.0
    %626 = vmatprep.subr.mxu0 0.0
    %627 = vmatpush1.msra.mxu0 0.0
    %628 = vmatprep.subr.mxu0 0.0
    %629 = vmatpush1.msra.mxu0 0.0
    %630 = vmatprep.subr.mxu0 0.0
    %631 = vmatpush1.msra.mxu0 0.0
    %632 = vmatprep.subr.mxu0 0.0
    %633 = vmatpush1.msra.mxu0 0.0
    %634 = vmatprep.subr.mxu0 0.0
    %635 = vmatpush1.msra.mxu0 0.0
    %636 = vmatprep.subr.mxu0 0.0
    %637 = vmatpush1.msra.mxu0 0.0
    %638 = vmatprep.subr.mxu0 0.0
    %639 = vmatpush1.msra.mxu0 0.0
    %640 = vmatprep.subr.mxu0 0.0
    %641 = vmatpush1.msra.mxu0 0.0
    %642 = vmatprep.subr.mxu0 0.0
    %643 = vmatpush1.msra.mxu0 0.0
    %644 = vmatprep.subr.mxu0 0.0
    %645 = vmatpush1.msra.mxu0 %v426
    %646 = vmatprep.subr.mxu0 0.0
    %647 = vmatpush1.msra.mxu0 %v425
    %648 = vmatprep.subr.mxu0 0.0
    %649 = vmatpush2.msra.mxu0 0.0
    %650 = vmatprep.subr.mxu0 0.0
    %651 = vmatpush2.msra.mxu0 0.0
    %652 = vmatprep.subr.mxu0 0.0
    %653 = vmatpush2.msra.mxu0 0.0
    %654 = vmatprep.subr.mxu0 0.0
    %655 = vmatpush2.msra.mxu0 0.0
    %656 = vmatprep.subr.mxu0 0.0
    %657 = vmatpush2.msra.mxu0 0.0
    %658 = vmatprep.subr.mxu0 0.0
    %659 = vmatpush2.msra.mxu0 0.0
    %660 = vmatprep.subr.mxu0 0.0
    %661 = vmatpush2.msra.mxu0 0.0
    %662 = vmatprep.subr.mxu0 0.0
    %663 = vmatpush2.msra.mxu0 0.0
    %664 = vmatprep.subr.mxu0 0.0
    %665 = vmatpush2.msra.mxu0 0.0
    %666 = vmatprep.subr.mxu0 0.0
    %667 = vmatpush2.msra.mxu0 0.0
    %668 = vmatprep.subr.mxu0 0.0
    %669 = vmatpush2.msra.mxu0 0.0
    %670 = vmatprep.subr.mxu0 0.0
    %671 = vmatpush2.msra.mxu0 0.0
    %672 = vmatprep.subr.mxu0 0.0
    %673 = vmatpush2.msra.mxu0 0.0
    %674 = vmatprep.subr.mxu0 0.0
    %675 = vmatpush2.msra.mxu0 0.0
    %676 = vmatprep.subr.mxu0 0.0
    %677 = vmatpush2.msra.mxu0 0.0
    %678 = vmatprep.subr.mxu0 0.0
    %679 = vmatpush2.msra.mxu0 0.0
    %680 = vmatprep.mubr.f32.mxu0 0.0
    %681 = vmatmul.mubr.f32.gmra.mxu0 %v611
    %v682 = vpop.f32.mrf.mxu0
    %v683 = vadd.f32 %v602, %v682
    %v684 = vpop.f32.mrf.mxu0
    %685 = vmatprep.mubr.f32.mxu0 0.0
    %686 = vmatmul.mubr.f32.gmra.mxu0 %v614
    %v687 = vpop.f32.mrf.mxu0
    %v688 = vadd.f32 %v607, %v687
    %v689 = vpop.f32.mrf.mxu0
    %690 = vdwg.mxu0
    %v691 = vld [vmem:[%s12] sm:$0xff]
    %v692 = vld [vmem:[%s12 + $0x8] sm:$0xff]
    %694 = vset.pattern.permute.xlu0 0
    %695 = vperm.xlu0 %694, %v691
    %v696 = vpop.permute.xlu0 %695
    %699 = vset.pattern.permute.xlu0 0
    %700 = vperm.xlu0 %699, %v692
    %v701 = vpop.permute.xlu0 %700
    %v703 = vadd.f32 %v683, %v696
    %v704 = vadd.f32 %v688, %v701
    %v705 = vmax.f32 %v703, 0.0
    %v706 = vmax.f32 %v704, 0.0
    %v707 = vld [vmem:[%s13] sm:$0xff]
    %v708 = vld [vmem:[%s13 + $0x8] sm:$0xff]
    %710 = vset.pattern.permute.xlu0 0
    %711 = vperm.xlu0 %710, %v707
    %v712 = vpop.permute.xlu0 %711
    %715 = vset.pattern.permute.xlu0 0
    %716 = vperm.xlu0 %715, %v708
    %v717 = vpop.permute.xlu0 %716
    %v719 = vmul.f32 %v705, %v712
    %v720 = vmul.f32 %v706, %v717
    %v721 = vsel %vm528, %v719, 0.0
    %v722 = vsel %vm528, %v720, 0.0
    %v723 = vadd.f32 %v721, %v722
    %v724 = vrot.slane %v723, 4
    %v725 = vadd.f32 %v723, %v724
    %v726 = vrot.slane %v725, 2
    %v727 = vadd.f32 %v725, %v726
    %v728 = vrot.slane %v727, 1
    %v729 = vadd.f32 %v727, %v728
    %v730 = vld [vmem:[#allocation2] sm:$0x1]
    %732 = vset.pattern.permute.xlu0 0
    %733 = vperm.xlu0 %732, %v730
    %v734 = vpop.permute.xlu0 %733
    %v736 = vlaneseq
    %v737 = vshrl.u32 %v736, 7
    %v738 = vsub.s32 0, %v737
    %v739 = vrot.slane %v734, %v738
    %v740 = vadd.f32 %v729, %v739
    %vm741 = vcmask 122880
    %742 = vst.msk [vmem:[#allocation3] sm:$0x1] %vm741, %v740
    // Predicated region
    $region62: #{two_tower_forward.1} parent=1 // pred_check
      _
    $region63: #{two_tower_forward.1} parent=1 // pred_check_branch
      %744 = sbr.rel (0) target = $region65
    $region64: #{two_tower_forward.1} parent=1 // pred_region
      %s746 = ssub.s32 16, 16
      %747 = vsyncadd [#allocation4], %s746
      %s749 = sshll.u32 [#allocation3], 4
      %s750 = int_to_ptr.vmem [resolvable:$true] %s749
      %752 = dma.vmem_to_hbm [thread:$0]  %s750, 16, %s15, [#allocation4]
    $region65: #{two_tower_forward.1} parent=1 // pred_fallthru
      _
    // Predicated region
    $region66: #{two_tower_forward.1} parent=1 // pred_check
      _
    $region67: #{two_tower_forward.1} parent=1 // pred_check_branch
      %754 = sbr.rel (0) target = $region69
    $region68: #{two_tower_forward.1} parent=1 // pred_region
      %755 = dma.done [#allocation4], 16
    $region69: #{two_tower_forward.1} parent=1 // pred_fallthru
      _
    %756 = vsyncpa [#allocation4], 1

</llo_original>
